<compile_context>
chip_gen: v7x
topology: tpu7x:2x2x1
jax: 0.10.0
libtpu: 0.0.40
codegen_flags: <defaults>
</compile_context>

<pallas_src>
import jax
import jax.numpy as jnp
from jax import lax
from jax.experimental import pallas as pl
from jax.experimental.pallas import tpu as pltpu


def lm_head_kernel(x_ref, w_ref, b_ref, o_ref):
    # x_ref: (tm, D) bf16, w_ref: (tn, D) bf16, b_ref: (1, tn) f32,
    # o_ref: (tm, tn) f32.
    # Contract x dim 1 with w dim 1 (i.e. x @ W^T) on the MXU, f32 accumulation.
    acc = lax.dot_general(
        x_ref[...],
        w_ref[...],
        dimension_numbers=(((1,), (1,)), ((), ())),
        preferred_element_type=jnp.float32,
    )
    # Bias add + cast stay in the kernel epilogue (VPU slot, hidden under the
    # MXU/DMA-bound main loop).
    o_ref[...] = (acc + b_ref[...]).astype(o_ref.dtype)


def _pick_tile(total, target, align):
    """Largest tile <= target aligned to `align`, or the full dim if it fits."""
    if total <= target:
        return total
    return max(align, (target // align) * align)


def lm_head(x, weight, bias, *, tm_target=256, tn_target=512):
    """LMHead forward: x @ weight.T + bias.

    x:      (B, S, D)  float32
    weight: (V, D)     float32   (PyTorch nn.Linear layout: out_features, in_features)
    bias:   (V,)       float32
    returns (B, S, V)  float32
    """
    B, S, D = x.shape
    V, D_w = weight.shape
    assert D == D_w, "weight in_features must match d_model"
    M = B * S

    # bf16 streaming of the bandwidth-dominant operands; f32 bias and output.
    x2d = x.reshape(M, D).astype(jnp.bfloat16)
    w = weight.astype(jnp.bfloat16)          # (V, D), no transpose in the wrapper
    b2d = bias.astype(jnp.float32).reshape(1, V)

    # Tile selection: big lane-dense vocab tiles, MXU-friendly M tiles.
    tm = _pick_tile(M, tm_target, 8)
    tn = _pick_tile(V, tn_target, 128)
    # Keep >= 2 programs along the vocab axis when possible (v7x megacore).
    if tn == V and V >= 256 and (V // 2) % 128 == 0:
        tn = V // 2

    grid = (pl.cdiv(M, tm), pl.cdiv(V, tn))   # M outer, vocab inner (x stays resident)

    itemsize = lambda a: a.size * a.dtype.itemsize
    cost = pl.CostEstimate(
        flops=2 * M * D * V,
        transcendentals=0,
        bytes_accessed=itemsize(x2d) + itemsize(w) + itemsize(b2d) + M * V * 4,
    )

    out2d = pl.pallas_call(
        lm_head_kernel,
        out_shape=jax.ShapeDtypeStruct((M, V), jnp.float32),
        grid_spec=pltpu.PrefetchScalarGridSpec(
            num_scalar_prefetch=0,
            grid=grid,
            in_specs=[
                # Activations: block index independent of the inner vocab axis,
                # so this tile is not re-DMA'd across the vocab sweep. (It is
                # still double-buffered by default; tile targets are sized with
                # that 2x in mind for v7x's 64 MiB VMEM.)
                pl.BlockSpec((tm, D), lambda i, j: (i, 0)),
                # Vocab tile of the (V, D) weight -- streamed, no transpose.
                pl.BlockSpec((tn, D), lambda i, j: (j, 0)),
                # Matching bias tile.
                pl.BlockSpec((1, tn), lambda i, j: (0, j)),
            ],
            out_specs=pl.BlockSpec((tm, tn), lambda i, j: (i, j)),
        ),
        compiler_params=pltpu.CompilerParams(
            dimension_semantics=("parallel", "parallel"),
            vmem_limit_bytes=64 * 1024 * 1024,
        ),
        cost_estimate=cost,
    )(x2d, w, b2d)

    return out2d.reshape(B, S, V)


if __name__ == "__main__":
    # config: d_model=32, vocab_size=256 (use_mup=False, no tied embedding)
    # TODO(synk): MuReadout / tied-embedding branches are init-time wiring only;
    # the forward pass is the same dense projection implemented here.
    B, S, D, V = 2, 8, 32, 256

    key = jax.random.PRNGKey(0)
    kx, kw, kb = jax.random.split(key, 3)

    x = jax.random.normal(kx, (B, S, D), dtype=jnp.float32)
    # Deterministic parameter init (mimics nn.Linear's uniform(-1/sqrt(D), 1/sqrt(D)))
    bound = 1.0 / jnp.sqrt(jnp.float32(D))
    weight = jax.random.uniform(kw, (V, D), dtype=jnp.float32,
                                minval=-bound, maxval=bound)
    bias = jax.random.uniform(kb, (V,), dtype=jnp.float32,
                              minval=-bound, maxval=bound)

    out = lm_head(x, weight, bias)
    out = jax.block_until_ready(out)
    assert out.shape == (B, S, V)

    # Tight check against a reference using the same bf16-cast operands
    # (isolates kernel correctness from the intentional bf16 quantization).
    xb = x.astype(jnp.bfloat16).astype(jnp.float32)
    wb = weight.astype(jnp.bfloat16).astype(jnp.float32)
    ref_bf16 = xb @ wb.T + bias
    assert jnp.allclose(out, ref_bf16, atol=1e-4, rtol=1e-4)

    # Loose sanity check against the full-f32 reference (bf16 streaming error).
    ref_f32 = x @ weight.T + bias
    assert jnp.allclose(out, ref_f32, atol=3e-2, rtol=3e-2)

    print("KERNEL_OK")
</pallas_src>

<mosaic_0001>
module attributes {stable_mosaic.version = 11 : i64} {
  func.func @lm_head_kernel(%arg0: i32, %arg1: i32, %arg2: memref<16x32xbf16, #tpu.memory_space<vmem>>, %arg3: memref<128x32xbf16, #tpu.memory_space<vmem>>, %arg4: memref<1x128xf32, #tpu.memory_space<vmem>>, %arg5: memref<16x128xf32, #tpu.memory_space<vmem>>) attributes {dimension_semantics = [#tpu.dimension_semantics<parallel>, #tpu.dimension_semantics<parallel>], iteration_bounds = array<i64: 1, 2>, scalar_prefetch = 0 : i64, scratch_operands = 0 : i64, tpu.core_type = #tpu.core_type<tc>, window_params = [{transform_indices = @transform_0, window_bounds = array<i64: 16, 32>}, {transform_indices = @transform_1, window_bounds = array<i64: 128, 32>}, {transform_indices = @transform_2, window_bounds = array<i64: 1, 128>}, {transform_indices = @transform_3, window_bounds = array<i64: 16, 128>}]} {
    %c0 = arith.constant 0 : index
    %c0_0 = arith.constant 0 : index
    %0 = vector.load %arg2[%c0, %c0_0] : memref<16x32xbf16, #tpu.memory_space<vmem>>, vector<16x32xbf16>
    %c0_1 = arith.constant 0 : index
    %c0_2 = arith.constant 0 : index
    %1 = vector.load %arg3[%c0_1, %c0_2] : memref<128x32xbf16, #tpu.memory_space<vmem>>, vector<128x32xbf16>
    %cst = arith.constant dense<0.000000e+00> : vector<16x128xf32>
    %2 = tpu.matmul %0, %1, %cst {dimension_numbers = #tpu.dot_dimension_numbers<[1], [1], [0], [0], [0, 0, 1, 0], [], []>} : vector<16x32xbf16>, vector<128x32xbf16>, vector<16x128xf32> -> vector<16x128xf32>
    %c0_3 = arith.constant 0 : index
    %c0_4 = arith.constant 0 : index
    %3 = vector.load %arg4[%c0_3, %c0_4] : memref<1x128xf32, #tpu.memory_space<vmem>>, vector<1x128xf32>
    %4 = vector.broadcast %3 : vector<1x128xf32> to vector<16x128xf32>
    %5 = arith.addf %2, %4 : vector<16x128xf32>
    %c0_5 = arith.constant 0 : index
    %c0_6 = arith.constant 0 : index
    %6 = vector.load %arg5[%c0_5, %c0_6] : memref<16x128xf32, #tpu.memory_space<vmem>>, vector<16x128xf32>
    tpu.vector_store %arg5[%c0_5, %c0_6], %5 {strides = array<i32>} : memref<16x128xf32, #tpu.memory_space<vmem>>, vector<16x128xf32>,
    return
  }
  func.func @transform_0(%arg0: i32, %arg1: i32) -> (i32, i32) {
    %c0_i32 = arith.constant 0 : i32
    %c0_i32_0 = arith.constant 0 : i32
    return %arg0, %c0_i32 : i32, i32
  }
  func.func @transform_1(%arg0: i32, %arg1: i32) -> (i32, i32) {
    %c0_i32 = arith.constant 0 : i32
    %c0_i32_0 = arith.constant 0 : i32
    return %arg1, %c0_i32 : i32, i32
  }
  func.func @transform_2(%arg0: i32, %arg1: i32) -> (i32, i32) {
    %c0_i32 = arith.constant 0 : i32
    %c0_i32_0 = arith.constant 0 : i32
    return %c0_i32, %arg1 : i32, i32
  }
  func.func @transform_3(%arg0: i32, %arg1: i32) -> (i32, i32) {
    %c0_i32 = arith.constant 0 : i32
    return %arg0, %arg1 : i32, i32
  }
}

</mosaic_0001>

<llo_original>
// kernel: tpu_custom_call.1
$region0: #{tpu_custom_call.1}
  #allocation0 [shape = 'u32[]', space=smem, size = 0x4, offset = 0x4, fixed_abs, tag = 'smem constant byte address 0x4 - core index']
  #allocation1 [shape = 'u32[144,128]{1,0:T(1,128)}', space=vmem, size = 0x12000, scoped, tag = 'internal scratch']
  %s0 = inlined_call_operand.hbm [shape: bf16[16,32], index: 0, kind: input, shape index: {}]
  %s1 = inlined_call_operand.hbm [shape: bf16[256,32], index: 1, kind: input, shape index: {}]
  %s2 = inlined_call_operand.hbm [shape: f32[1,256], index: 2, kind: input, shape index: {}]
  %s3 = inlined_call_operand.hbm [shape: f32[16,256], index: 3, kind: output, shape index: {}]
  %s4 = sld [smem:[#allocation0]]
  $region57: #{tpu_custom_call.1} parent=0
    _
  %s6 = ssub.s32 1, %s4
  %s7 = scalar_select 0, %s6, %s4
  $region1: #{tpu_custom_call.1} parent=0
    #allocation2 [shape = 'u8[4096]{0}', space=vmem, size = 0x1000, scoped, tag = 'input window, operand 0, single buffered']
    #allocation3 [shape = 's32[2]{0}', space=sflag, size = 0x8, scoped, tag = 'scoped memory for tpu_custom_call.1']
    #allocation4 [shape = 's32[2]{0}', space=sflag, size = 0x8, scoped, tag = 'scoped memory for tpu_custom_call.1']
    #allocation5 [shape = 'u8[65536]{0}', space=vmem, size = 0x10000, scoped, tag = 'input window, operand 1']
    #allocation6 [shape = 's32[2]{0}', space=sflag, size = 0x8, scoped, tag = 'scoped memory for tpu_custom_call.1']
    #allocation7 [shape = 'u8[1024]{0}', space=vmem, size = 0x400, scoped, tag = 'input window, operand 2']
    #allocation8 [shape = 'u8[16384]{0}', space=vmem, size = 0x4000, scoped, tag = 'output window, operand 0']
    %8 = vsyncpa [#allocation3], 0
    %9 = vsyncpa [#allocation6], 0
    %s10 = scalar_lea.sflag [#allocation6], 1
    %11 = vsyncpa %s10, 0
    %12 = vsyncpa [#allocation4], 0
    %s13 = scalar_lea.sflag [#allocation4], 1
    %14 = vsyncpa %s13, 0
    loop: start=0, step=1, limit=4
    $region2: #{tpu_custom_call.1} parent=1 // loop_pre_header
      _
    $region3: #{tpu_custom_call.1} parent=1 // loop_header
      %s16 = sphi 0, %s20
      %p17 = scmp.ge.s32.totalorder %s16, 4
      %s23 = sphi 0, %s35
      %s24 = sphi 0, %s31
      %s25 = sphi 0, %s23
      %s26 = sphi 0, %s24
      %s27 = sphi 0, %s25
      %s28 = sphi 0, %s26
      %s38 = sphi 0, %s40
      %s41 = sphi 0, %s38
      %s42 = sphi 0, %s41
      %s58 = sphi 0, %s42
      %s64 = sphi 0, %s66
      %s67 = sphi 0, %s64
      %s68 = sphi 0, %s67
      %s84 = sphi 0, %s68
      %s90 = sphi 0, %s92
      %s93 = sphi 0, %s90
      %s94 = sphi 0, %s93
      %s110 = sphi 0, %s94
      %s118 = sphi 0, %s120
      %s121 = sphi 0, %s118
      %s122 = sphi 0, %s121
      %s138 = sphi 0, %s122
    $region4: #{tpu_custom_call.1} parent=1 // loop_header_branch
      %19 = sbr.rel (%p17) target = $region8
    $region5: #{tpu_custom_call.1} parent=1 // loop_body
      %s21 = ssub.s32 %s16, 1
      %s22 = ssub.s32 %s16, 2
      %s29 = sadd.s32 1, %s24
      %p30 = scmp.ge.s32.totalorder %s29, 2
      %s31 = scalar_select %p30, 0, %s29
      %s32 = sadd.s32 1, %s23
      %s33 = scalar_select %p30, %s32, %s23
      %p34 = scmp.ge.s32.totalorder %s33, 1
      %s35 = scalar_select %p34, 0, %s33
      %s36 = ssub.s32 %s23, %s35
      %p37 = scmp.eq.s32.totalorder %s36, 0
      %s39 = sadd.s32 %s38, 1
      %s40 = scalar_select %p37, %s38, %s39
      %p43 = pneg %p37
      %p44 = scmp.eq.s32.totalorder %s16, 1
      %p45 = por %p43, %p44
      %p46 = scmp.ne.s32.totalorder %s38, %s41
      %p47 = scmp.eq.s32.totalorder %s16, 0
      %p48 = por %p46, %p47
      %p49 = scmp.ne.s32.totalorder %s38, %s41
      %p50 = scmp.eq.s32.totalorder %s21, 1
      %p51 = por %p49, %p50
      %p52 = scmp.ne.s32.totalorder %s41, %s42
      %p53 = scmp.eq.s32.totalorder %s21, 0
      %p54 = por %p52, %p53
      %p55 = scmp.ne.s32.totalorder %s41, %s42
      %p56 = scmp.eq.s32.totalorder %s22, 1
      %p57 = por %p55, %p56
      %p59 = scmp.ne.s32.totalorder %s42, %s58
      %p60 = scmp.eq.s32.totalorder %s22, 0
      %p61 = por %p59, %p60
      %s62 = ssub.s32 %s24, %s31
      %p63 = scmp.eq.s32.totalorder %s62, 0
      %s65 = sadd.s32 %s64, 1
      %s66 = scalar_select %p63, %s64, %s65
      %p69 = pneg %p63
      %p70 = scmp.eq.s32.totalorder %s16, 1
      %p71 = por %p69, %p70
      %p72 = scmp.ne.s32.totalorder %s64, %s67
      %p73 = scmp.eq.s32.totalorder %s16, 0
      %p74 = por %p72, %p73
      %p75 = scmp.ne.s32.totalorder %s64, %s67
      %p76 = scmp.eq.s32.totalorder %s21, 1
      %p77 = por %p75, %p76
      %p78 = scmp.ne.s32.totalorder %s67, %s68
      %p79 = scmp.eq.s32.totalorder %s21, 0
      %p80 = por %p78, %p79
      %p81 = scmp.ne.s32.totalorder %s67, %s68
      %p82 = scmp.eq.s32.totalorder %s22, 1
      %p83 = por %p81, %p82
      %p85 = scmp.ne.s32.totalorder %s68, %s84
      %p86 = scmp.eq.s32.totalorder %s22, 0
      %p87 = por %p85, %p86
      %s88 = ssub.s32 %s24, %s31
      %p89 = scmp.eq.s32.totalorder %s88, 0
      %s91 = sadd.s32 %s90, 1
      %s92 = scalar_select %p89, %s90, %s91
      %p95 = pneg %p89
      %p96 = scmp.eq.s32.totalorder %s16, 1
      %p97 = por %p95, %p96
      %p98 = scmp.ne.s32.totalorder %s90, %s93
      %p99 = scmp.eq.s32.totalorder %s16, 0
      %p100 = por %p98, %p99
      %p101 = scmp.ne.s32.totalorder %s90, %s93
      %p102 = scmp.eq.s32.totalorder %s21, 1
      %p103 = por %p101, %p102
      %p104 = scmp.ne.s32.totalorder %s93, %s94
      %p105 = scmp.eq.s32.totalorder %s21, 0
      %p106 = por %p104, %p105
      %p107 = scmp.ne.s32.totalorder %s93, %s94
      %p108 = scmp.eq.s32.totalorder %s22, 1
      %p109 = por %p107, %p108
      %p111 = scmp.ne.s32.totalorder %s94, %s110
      %p112 = scmp.eq.s32.totalorder %s22, 0
      %p113 = por %p111, %p112
      %s114 = ssub.s32 %s23, %s35
      %s115 = ssub.s32 %s24, %s31
      %s116 = sor.u32 %s114, %s115
      %p117 = scmp.eq.s32.totalorder %s116, 0
      %s119 = sadd.s32 %s118, 1
      %s120 = scalar_select %p117, %s118, %s119
      %p123 = pneg %p117
      %p124 = scmp.eq.s32.totalorder %s16, 1
      %p125 = por %p123, %p124
      %p126 = scmp.ne.s32.totalorder %s118, %s121
      %p127 = scmp.eq.s32.totalorder %s16, 0
      %p128 = por %p126, %p127
      %p129 = scmp.ne.s32.totalorder %s118, %s121
      %p130 = scmp.eq.s32.totalorder %s21, 1
      %p131 = por %p129, %p130
      %p132 = scmp.ne.s32.totalorder %s121, %s122
      %p133 = scmp.eq.s32.totalorder %s21, 0
      %p134 = por %p132, %p133
      %p135 = scmp.ne.s32.totalorder %s121, %s122
      %p136 = scmp.eq.s32.totalorder %s22, 1
      %p137 = por %p135, %p136
      %p139 = scmp.ne.s32.totalorder %s122, %s138
      %p140 = scmp.eq.s32.totalorder %s22, 0
      %p141 = por %p139, %p140
      %p142 = scmp.le.s32.totalorder 1, %s16
      %p143 = scmp.lt.s32.totalorder %s16, 3
      %p144 = pnand %p142, %p143
      %p145 = pneg %p144
      // Predicated region
      $region9: #{tpu_custom_call.1} parent=5 // pred_check
        _
      $region10: #{tpu_custom_call.1} parent=5 // pred_check_branch
        %147 = sbr.rel (%p144) target = $region12
      $region11: #{tpu_custom_call.1} parent=5 // pred_region
        %s148 = ssub.s32 %s16, 1
        // Predicated region
        $region13: #{tpu_custom_call.1} parent=11 // pred_check
          %p149 = pneg %p54
        $region14: #{tpu_custom_call.1} parent=11 // pred_check_branch
          %151 = sbr.rel (%p149) target = $region16
        $region15: #{tpu_custom_call.1} parent=11 // pred_region
          %s152 = smul.u32 2, %s25
          %s154 = ssub.s32 128, 128
          %155 = vsyncadd [#allocation3], %s154
          %s156 = smul.addr %s152, 64
          %s157 = scalar_lea.hbm %s0, %s156
          %s158 = sshll.u32 [#allocation2], 4
          %s159 = int_to_ptr.vmem [resolvable:$true] %s158
          %164 = dma.hbm_to_vmem [thread:$0]  %s157, 128, %s159, [#allocation3], 64, 64, 4
        $region16: #{tpu_custom_call.1} parent=11 // pred_fallthru
          _
      $region12: #{tpu_custom_call.1} parent=5 // pred_fallthru
        _
      %p165 = scmp.lt.s32.totalorder %s16, 2
      // Predicated region
      $region17: #{tpu_custom_call.1} parent=5 // pred_check
        %p166 = pneg %p165
      $region18: #{tpu_custom_call.1} parent=5 // pred_check_branch
        %168 = sbr.rel (%p166) target = $region20
      $region19: #{tpu_custom_call.1} parent=5 // pred_region
        // Predicated region
        $region21: #{tpu_custom_call.1} parent=19 // pred_check
          %p169 = pneg %p74
        $region22: #{tpu_custom_call.1} parent=19 // pred_check_branch
          %171 = sbr.rel (%p169) target = $region24
        $region23: #{tpu_custom_call.1} parent=19 // pred_region
          %s172 = sand.u32 %s16, 1
          %s173 = scalar_lea.sflag [#allocation6], %s172
          %s174 = sand.u32 %s64, 1
          %s175 = smul.addr %s174, 64
          %s176 = scalar_lea.vmem [#allocation5], %s175
          %s177 = smul.u32 16, %s24
          %s179 = ssub.s32 1024, 1024
          %180 = vsyncadd %s173, %s179
          %s181 = smul.addr %s177, 64
          %s182 = scalar_lea.hbm %s1, %s181
          %s183 = sshll.u32 %s176, 4
          %s184 = int_to_ptr.vmem [resolvable:$true] %s183
          %189 = dma.hbm_to_vmem [thread:$0]  %s182, 1024, %s184, %s173, 64, 64, 4
        $region24: #{tpu_custom_call.1} parent=19 // pred_fallthru
          _
        // Predicated region
        $region25: #{tpu_custom_call.1} parent=19 // pred_check
          %p190 = pneg %p100
        $region26: #{tpu_custom_call.1} parent=19 // pred_check_branch
          %192 = sbr.rel (%p190) target = $region28
        $region27: #{tpu_custom_call.1} parent=19 // pred_region
          %s193 = sand.u32 %s16, 1
          %s194 = scalar_lea.sflag [#allocation6], %s193
          %s195 = sand.u32 %s90, 1
          %s196 = scalar_lea.vmem [#allocation7], %s195
          %s198 = ssub.s32 16, 16
          %199 = vsyncadd %s194, %s198
          %s200 = smul.addr %s24, 16
          %s201 = scalar_lea.hbm %s2, %s200
          %s203 = sshll.u32 %s196, 4
          %s204 = int_to_ptr.vmem [resolvable:$true] %s203
          %206 = dma.hbm_to_vmem [thread:$0]  %s201, 16, %s204, %s194
        $region28: #{tpu_custom_call.1} parent=19 // pred_fallthru
          _
      $region20: #{tpu_custom_call.1} parent=5 // pred_fallthru
        _
      %p207 = scmp.le.s32.totalorder 1, %s16
      %p208 = scmp.lt.s32.totalorder %s16, 3
      %p209 = pnand %p207, %p208
      %p210 = pneg %p209
      // Predicated region
      $region29: #{tpu_custom_call.1} parent=5 // pred_check
        _
      $region30: #{tpu_custom_call.1} parent=5 // pred_check_branch
        %212 = sbr.rel (%p209) target = $region32
      $region31: #{tpu_custom_call.1} parent=5 // pred_region
        %s213 = ssub.s32 %s16, 1
        // Predicated region
        $region33: #{tpu_custom_call.1} parent=31 // pred_check
          %p214 = pneg %p54
        $region34: #{tpu_custom_call.1} parent=31 // pred_check_branch
          %216 = sbr.rel (%p214) target = $region36
        $region35: #{tpu_custom_call.1} parent=31 // pred_region
          %217 = dma.done [#allocation3], 128
        $region36: #{tpu_custom_call.1} parent=31 // pred_fallthru
          _
        %s218 = sand.u32 %s21, 1
        %s219 = scalar_lea.sflag [#allocation6], %s218
        %s220 = sand.u32 %s67, 1
        %s221 = smul.addr %s220, 64
        %s222 = scalar_lea.vmem [#allocation5], %s221
        // Predicated region
        $region37: #{tpu_custom_call.1} parent=31 // pred_check
          %p223 = pneg %p80
        $region38: #{tpu_custom_call.1} parent=31 // pred_check_branch
          %225 = sbr.rel (%p223) target = $region40
        $region39: #{tpu_custom_call.1} parent=31 // pred_region
          %226 = dma.done %s219, 1024
        $region40: #{tpu_custom_call.1} parent=31 // pred_fallthru
          _
        %s227 = sand.u32 %s21, 1
        %s228 = scalar_lea.sflag [#allocation6], %s227
        %s229 = sand.u32 %s93, 1
        %s230 = scalar_lea.vmem [#allocation7], %s229
        // Predicated region
        $region41: #{tpu_custom_call.1} parent=31 // pred_check
          %p231 = pneg %p106
        $region42: #{tpu_custom_call.1} parent=31 // pred_check_branch
          %233 = sbr.rel (%p231) target = $region44
        $region43: #{tpu_custom_call.1} parent=31 // pred_region
          %234 = dma.done %s228, 16
        $region44: #{tpu_custom_call.1} parent=31 // pred_fallthru
          _
        %p235 = pneg %p54
        %p236 = pneg %p51
        %s237 = sand.u32 %s21, 1
        %s238 = scalar_lea.sflag [#allocation6], %s237
        %s239 = sand.u32 %s67, 1
        %s240 = smul.addr %s239, 64
        %s241 = scalar_lea.vmem [#allocation5], %s240
        %p242 = pneg %p80
        %p243 = pneg %p77
        %s244 = sand.u32 %s21, 1
        %s245 = scalar_lea.sflag [#allocation6], %s244
        %s246 = sand.u32 %s93, 1
        %s247 = scalar_lea.vmem [#allocation7], %s246
        %p248 = pneg %p106
        %p249 = pneg %p103
        %p250 = pneg %p134
        %p251 = pneg %p131
        %s252 = sand.u32 %s121, 1
        %s253 = scalar_lea.sflag [#allocation4], %s252
        %s254 = sand.u32 %s121, 1
        %s255 = smul.addr %s254, 16
        %s256 = scalar_lea.vmem [#allocation8], %s255
        %s257 = smul.u32 2, %s25
        %s258 = smul.u32 16, %s26
        %s259 = smul.u32 2, %s25
        %v261 = vld [vmem:[#allocation2] sm:$0xf]
        %v262 = vld [vmem:[#allocation2 + $0x4] sm:$0xf]
        %v263 = vld [vmem:[%s222] sm:$0xf]
        %v264 = vld [vmem:[%s222 + $0x4] sm:$0xf]
        %v265 = vld [vmem:[%s222 + $0x8] sm:$0xf]
        %v266 = vld [vmem:[%s222 + $0xc] sm:$0xf]
        %v267 = vld [vmem:[%s222 + $0x10] sm:$0xf]
        %v268 = vld [vmem:[%s222 + $0x14] sm:$0xf]
        %v269 = vld [vmem:[%s222 + $0x18] sm:$0xf]
        %v270 = vld [vmem:[%s222 + $0x1c] sm:$0xf]
        %v271 = vld [vmem:[%s222 + $0x20] sm:$0xf]
        %v272 = vld [vmem:[%s222 + $0x24] sm:$0xf]
        %v273 = vld [vmem:[%s222 + $0x28] sm:$0xf]
        %v274 = vld [vmem:[%s222 + $0x2c] sm:$0xf]
        %v275 = vld [vmem:[%s222 + $0x30] sm:$0xf]
        %v276 = vld [vmem:[%s222 + $0x34] sm:$0xf]
        %v277 = vld [vmem:[%s222 + $0x38] sm:$0xf]
        %v278 = vld [vmem:[%s222 + $0x3c] sm:$0xf]
        %v279 = vld [vmem:[%s230] sm:$0x1]
        %v281 = vlaneseq
        %v282 = vshrl.u32 %v281, 7
        %v283 = vsub.s32 0, %v282
        %v284 = vrot.slane %v279, %v283
        %v288 = vunpack.c.l.b16 %v261
        %v289 = vunpack.c.l.b16 %v262
        %v290 = vpack.c.b16 %v289, %v288
        %v307 = vunpack.c.l.b16 %v263
        %v308 = vunpack.c.l.b16 %v264
        %v309 = vunpack.c.l.b16 %v265
        %v310 = vunpack.c.l.b16 %v266
        %v311 = vunpack.c.l.b16 %v267
        %v312 = vunpack.c.l.b16 %v268
        %v313 = vunpack.c.l.b16 %v269
        %v314 = vunpack.c.l.b16 %v270
        %v315 = vunpack.c.l.b16 %v271
        %v316 = vunpack.c.l.b16 %v272
        %v317 = vunpack.c.l.b16 %v273
        %v318 = vunpack.c.l.b16 %v274
        %v319 = vunpack.c.l.b16 %v275
        %v320 = vunpack.c.l.b16 %v276
        %v321 = vunpack.c.l.b16 %v277
        %v322 = vunpack.c.l.b16 %v278
        %v323 = vpack.c.b16 %v308, %v307
        %v324 = vpack.c.b16 %v310, %v309
        %v325 = vpack.c.b16 %v312, %v311
        %v326 = vpack.c.b16 %v314, %v313
        %v327 = vpack.c.b16 %v316, %v315
        %v328 = vpack.c.b16 %v318, %v317
        %v329 = vpack.c.b16 %v320, %v319
        %v330 = vpack.c.b16 %v322, %v321
        %vm331 = vcmask 261120
        %v333 = vsel %vm331, %v290, 0
        %v336 = vsel %vm331, %v323, 0
        %v339 = vsel %vm331, %v324, 0
        %v342 = vsel %vm331, %v325, 0
        %v345 = vsel %vm331, %v326, 0
        %v348 = vsel %vm331, %v327, 0
        %v351 = vsel %vm331, %v328, 0
        %v354 = vsel %vm331, %v329, 0
        %v357 = vsel %vm331, %v330, 0
        %359 = vmatprep.subr.bf16.mxu0 0
        %360 = vmatpush1.bf16.xpose.msra.mxu0 %v336
        %361 = vmatprep.subr.bf16.mxu0 0
        %362 = vmatpush1.bf16.xpose.msra.mxu0 %v339
        %363 = vmatprep.subr.bf16.mxu0 0
        %364 = vmatpush1.bf16.xpose.msra.mxu0 %v342
        %365 = vmatprep.subr.bf16.mxu0 0
        %366 = vmatpush1.bf16.xpose.msra.mxu0 %v345
        %367 = vmatprep.subr.bf16.mxu0 0
        %368 = vmatpush1.bf16.xpose.msra.mxu0 %v348
        %369 = vmatprep.subr.bf16.mxu0 0
        %370 = vmatpush1.bf16.xpose.msra.mxu0 %v351
        %371 = vmatprep.subr.bf16.mxu0 0
        %372 = vmatpush1.bf16.xpose.msra.mxu0 %v354
        %373 = vmatprep.subr.bf16.mxu0 0
        %374 = vmatpush1.bf16.xpose.msra.mxu0 %v357
        %375 = vmatprep.subr.bf16.mxu0 0
        %376 = vmatpush1.bf16.xpose.msra.mxu0 0
        %377 = vmatprep.subr.bf16.mxu0 0
        %378 = vmatpush1.bf16.xpose.msra.mxu0 0
        %379 = vmatprep.subr.bf16.mxu0 0
        %380 = vmatpush1.bf16.xpose.msra.mxu0 0
        %381 = vmatprep.subr.bf16.mxu0 0
        %382 = vmatpush1.bf16.xpose.msra.mxu0 0
        %383 = vmatprep.subr.bf16.mxu0 0
        %384 = vmatpush1.bf16.xpose.msra.mxu0 0
        %385 = vmatprep.subr.bf16.mxu0 0
        %386 = vmatpush1.bf16.xpose.msra.mxu0 0
        %387 = vmatprep.subr.bf16.mxu0 0
        %388 = vmatpush1.bf16.xpose.msra.mxu0 0
        %389 = vmatprep.subr.bf16.mxu0 0
        %390 = vmatpush1.bf16.xpose.msra.mxu0 0
        %391 = vmatprep.mubr.bf16.mxu0 0
        %392 = vmatmul.mubr.bf16.gmra.mrb[0].mxu0 %v333
        %v393 = vpop.f32.mrb[0].mxu0
        %v394 = vadd.f32 %v284, %v393
        %v395 = vpop.f32.mrb[0].mxu0
        %v396 = vpop.f32.mrb[0].mxu0
        %v397 = vadd.f32 %v284, %v396
        %v398 = vpop.f32.mrb[0].mxu0
        %399 = vdwg.mxu0
        %400 = vst [vmem:[%s256] sm:$0xff] %v394
        %401 = vst [vmem:[%s256 + $0x8] sm:$0xff] %v397
        %s402 = sand.u32 %s121, 1
        %s403 = scalar_lea.sflag [#allocation4], %s402
        %s404 = sand.u32 %s121, 1
        %s405 = smul.addr %s404, 16
        %s406 = scalar_lea.vmem [#allocation8], %s405
        // Predicated region
        $region45: #{tpu_custom_call.1} parent=31 // pred_check
          %p407 = pneg %p131
        $region46: #{tpu_custom_call.1} parent=31 // pred_check_branch
          %409 = sbr.rel (%p407) target = $region48
        $region47: #{tpu_custom_call.1} parent=31 // pred_region
          %s410 = smul.u32 2, %s25
          %s412 = ssub.s32 256, 256
          %413 = vsyncadd %s403, %s412
          %s414 = smul.addr %s410, 2
          %s415 = sadd.s32 %s26, %s414
          %s416 = smul.addr %s415, 128
          %s417 = scalar_lea.hbm %s3, %s416
          %s418 = sshll.u32 %s406, 4
          %s419 = int_to_ptr.vmem [resolvable:$true] %s418
          %424 = dma.vmem_to_hbm [thread:$0]  %s419, 256, %s417, %s403, 128, 256, 8
        $region48: #{tpu_custom_call.1} parent=31 // pred_fallthru
          _
      $region32: #{tpu_custom_call.1} parent=5 // pred_fallthru
        _
      %p425 = scmp.le.s32.totalorder 2, %s16
      // Predicated region
      $region49: #{tpu_custom_call.1} parent=5 // pred_check
        %p426 = pneg %p425
      $region50: #{tpu_custom_call.1} parent=5 // pred_check_branch
        %428 = sbr.rel (%p426) target = $region52
      $region51: #{tpu_custom_call.1} parent=5 // pred_region
        %s429 = ssub.s32 %s16, 2
        // Predicated region
        $region53: #{tpu_custom_call.1} parent=51 // pred_check
          %p430 = pneg %p137
        $region54: #{tpu_custom_call.1} parent=51 // pred_check_branch
          %432 = sbr.rel (%p430) target = $region56
        $region55: #{tpu_custom_call.1} parent=51 // pred_region
          %s433 = sand.u32 %s122, 1
          %s434 = scalar_lea.sflag [#allocation4], %s433
          %s435 = sand.u32 %s122, 1
          %s436 = smul.addr %s435, 16
          %s437 = scalar_lea.vmem [#allocation8], %s436
          %438 = dma.done %s434, 256
        $region56: #{tpu_custom_call.1} parent=51 // pred_fallthru
          _
      $region52: #{tpu_custom_call.1} parent=5 // pred_fallthru
        _
    $region6: #{tpu_custom_call.1} parent=1 // loop_footer
      %s20 = sadd.s32 1, %s16
    $region7: #{tpu_custom_call.1} parent=1 // loop_footer_branch
      %15 = sbr.rel target = $region3
    $region8: #{tpu_custom_call.1} parent=1 // loop_exit
      _
    %439 = vsyncpa [#allocation3], 1
    %s440 = scalar_lea.sflag [#allocation3], 1
    %441 = vsyncpa %s440, 1
    %442 = vsyncpa [#allocation6], 1
    %s443 = scalar_lea.sflag [#allocation6], 1
    %444 = vsyncpa %s443, 1
    %445 = vsyncpa [#allocation4], 1
    %s446 = scalar_lea.sflag [#allocation4], 1
    %447 = vsyncpa %s446, 1

</llo_original>
